<compile_context>
chip_gen: v5e
topology: v5e:2x2
jax: 0.10.0
libtpu: 0.0.40
codegen_flags: <defaults>
</compile_context>

<pallas_src>
import functools

import jax
import jax.numpy as jnp
from jax.experimental import pallas as pl
from jax.experimental.pallas import tpu as pltpu


_VMEM_LIMIT = 48 * 1024 * 1024        # explicit scoped-VMEM limit (all gens)
_VMEM_BUDGET = 24 * 1024 * 1024       # budget for our double-buffered blocks
_XCOL_TILE_TARGET = 2 * 1024 * 1024   # ~2 MiB xcol tile (im2col path)


def _round_up(n, m):
    return ((n + m - 1) // m) * m


# ---------------------------------------------------------------------------
# Kernels
# ---------------------------------------------------------------------------
def _fused_conv_kernel(x_ref, w_ref, b_ref, o_ref, *, K, dilation, tl, n_tiles):
    """stride==1 path.  x_ref: (c, H)  w_ref: (K, O, c)  b_ref: (O, 1)
    o_ref: (O, L_pad).  All tap / tile offsets are static."""
    bias = b_ref[...]                                   # (O, 1) f32
    w_taps = [w_ref[k] for k in range(K)]               # each (O, c), hoisted
    out_ch = o_ref.shape[0]
    for t in range(n_tiles):                            # static unroll
        lo = t * tl
        acc = jnp.zeros((out_ch, tl), jnp.float32)
        for k in range(K):
            d = lo + k * dilation                       # static lane offset
            acc = acc + jnp.dot(w_taps[k], x_ref[:, d:d + tl],
                                preferred_element_type=jnp.float32)
        o_ref[:, lo:lo + tl] = (acc + bias).astype(o_ref.dtype)


def _matmul_bias_kernel(x_ref, w_ref, b_ref, o_ref):
    """im2col path.  x_ref: (CK, TN)  w_ref: (O, CK)  b_ref: (O, 1)  o_ref: (O, TN)."""
    acc = jnp.dot(w_ref[...], x_ref[...], preferred_element_type=jnp.float32)
    o_ref[...] = (acc + b_ref[...]).astype(o_ref.dtype)


# ---------------------------------------------------------------------------
# Wrapper
# ---------------------------------------------------------------------------
def _im2col_taps(xp, K, L, stride, dilation):
    b_i, b_j, c, _ = xp.shape
    span = (L - 1) * stride + 1
    return [jax.lax.slice(xp, (0, 0, 0, k * dilation),
                          (b_i, b_j, c, k * dilation + span),
                          (1, 1, 1, stride)) for k in range(K)]


def batch_conv1d(x, weight, bias=None, *, stride=1, padding=0, dilation=1,
                 use_pallas=None, operand_dtype=None):
    """JAX/Pallas equivalent of BatchConv1DLayer.forward.

    x: (b_i, b_j, c, h) (complex allowed; real part used),
    weight: (b_i, out_ch, c, K), bias: (b_i, out_ch) or None.
    Returns (b_i, b_j, out_ch, L_out).
    """
    x = jnp.real(jnp.asarray(x))
    weight = jnp.asarray(weight)

    b_i, b_j, c, h = x.shape
    b_i_w, out_ch, in_ch, K = weight.shape
    assert b_i == b_i_w, "dim=0 of x must be equal in size to dim=0 of weight"
    assert in_ch == c, "in_channels of weight must match channel dim of x"
    if bias is not None:
        bias = jnp.asarray(bias)
        assert bias.shape[0] == b_i, (
            "dim=0 of bias must be equal in size to dim=0 of weight")
        assert bias.shape == (b_i, out_ch), "bias must be (b_i, out_channels)"

    cdtype = jnp.promote_types(x.dtype, weight.dtype)
    if cdtype == jnp.float64:
        cdtype = jnp.float32                       # no f64 on TPU vector units
    x = x.astype(cdtype)
    weight = weight.astype(cdtype)
    mdtype = cdtype if operand_dtype is None else jnp.dtype(operand_dtype)
    out_dtype = cdtype

    h_pad = h + 2 * padding
    L = (h_pad - dilation * (K - 1) - 1) // stride + 1
    if L <= 0:
        raise ValueError("Kernel span larger than padded input (L_out <= 0).")

    xp = jnp.pad(x, ((0, 0), (0, 0), (0, 0), (padding, padding))) if padding > 0 else x

    # ---- tiny-problem bailout: pallas_call fixed cost dominates -----------
    macs = b_i * b_j * out_ch * L * c * K
    if use_pallas is None:
        use_pallas = macs >= (1 << 21)
    if not use_pallas:
        xw = jnp.stack(_im2col_taps(xp, K, L, stride, dilation), axis=0)
        out = jnp.einsum('iock,kijcl->ijol', weight, xw)
        if bias is not None:
            out = out + bias[:, None, :, None].astype(out.dtype)
        return out.astype(out_dtype)

    if bias is None:
        bias_r = jnp.zeros((b_i, out_ch, 1), jnp.float32)
    else:
        bias_r = bias.reshape(b_i, out_ch, 1).astype(jnp.float32)

    itemsize = jnp.dtype(mdtype).itemsize

    # ---- fused path (stride == 1): no im2col, no transposes ---------------
    if stride == 1:
        tl = min(512, _round_up(L, 128))
        while L > 64 * tl and tl < 4096:            # bound unrolled tile count
            tl *= 2
        L_pad = _round_up(L, tl)
        n_tiles = L_pad // tl
        H_total = L_pad + (K - 1) * dilation
        fused_bytes = (2 * c * H_total * itemsize        # resident x row (x2 buf)
                       + 2 * out_ch * L_pad * 4          # output row
                       + 2 * K * out_ch * c * itemsize)  # weights
        if fused_bytes <= _VMEM_BUDGET and n_tiles <= 128:
            xf = jnp.pad(xp, ((0, 0), (0, 0), (0, 0), (0, H_total - h_pad)))
            xf = xf.astype(mdtype)
            w_t = jnp.transpose(weight, (0, 3, 1, 2)).astype(mdtype)  # (b_i,K,O,c)
            kern = functools.partial(_fused_conv_kernel, K=K, dilation=dilation,
                                     tl=tl, n_tiles=n_tiles)
            out_full = pl.pallas_call(
                kern,
                out_shape=jax.ShapeDtypeStruct((b_i, b_j, out_ch, L_pad), out_dtype),
                grid=(b_i, b_j),
                in_specs=[
                    pl.BlockSpec((None, None, c, H_total), lambda i, j: (i, j, 0, 0)),
                    pl.BlockSpec((None, K, out_ch, c), lambda i, j: (i, 0, 0, 0)),
                    pl.BlockSpec((None, out_ch, 1), lambda i, j: (i, 0, 0)),
                ],
                out_specs=pl.BlockSpec((None, None, out_ch, L_pad),
                                       lambda i, j: (i, j, 0, 0)),
                compiler_params=pltpu.CompilerParams(
                    dimension_semantics=("parallel", "parallel"),
                    vmem_limit_bytes=_VMEM_LIMIT),
            )(xf, w_t, bias_r)
            if L_pad != L:
                out_full = out_full[..., :L]
            return out_full
        # TODO(synk): add an L-tiled (grid axis) fused variant for very long
        # rows instead of falling back to the im2col path.

    # ---- im2col path (stride > 1, or fused working set too large) ---------
    taps = _im2col_taps(xp, K, L, stride, dilation)
    xk = jnp.stack(taps, axis=3)                     # (b_i, b_j, c, K, L)
    xk = jnp.transpose(xk, (0, 2, 3, 1, 4))          # (b_i, c, K, b_j, L)
    CK = c * K
    N = b_j * L
    xcol = xk.reshape(b_i, CK, N).astype(mdtype)

    # Byte-sized tn: grow while the xcol tile stays under ~2 MiB and the
    # double-buffered blocks stay under the VMEM budget; then pad N UP.
    tn = 128
    while (tn < 4096
           and CK * (2 * tn) * itemsize <= _XCOL_TILE_TARGET
           and (2 * CK * (2 * tn) * itemsize
                + 2 * out_ch * (2 * tn) * 4
                + 2 * out_ch * CK * itemsize) <= _VMEM_BUDGET):
        tn *= 2
    tn = min(tn, _round_up(N, 128))
    N_pad = _round_up(N, tn)
    if N_pad != N:
        xcol = jnp.pad(xcol, ((0, 0), (0, 0), (0, N_pad - N)))

    w2 = weight.reshape(b_i, out_ch, CK).astype(mdtype)

    out_flat = pl.pallas_call(
        _matmul_bias_kernel,
        out_shape=jax.ShapeDtypeStruct((b_i, out_ch, N_pad), out_dtype),
        grid=(b_i, N_pad // tn),
        in_specs=[
            pl.BlockSpec((None, CK, tn), lambda i, n: (i, 0, n)),
            pl.BlockSpec((None, out_ch, CK), lambda i, n: (i, 0, 0)),
            pl.BlockSpec((None, out_ch, 1), lambda i, n: (i, 0, 0)),
        ],
        out_specs=pl.BlockSpec((None, out_ch, tn), lambda i, n: (i, 0, n)),
        compiler_params=pltpu.CompilerParams(
            dimension_semantics=("parallel", "parallel"),
            vmem_limit_bytes=_VMEM_LIMIT),
    )(xcol, w2, bias_r)

    out = out_flat[:, :, :N].reshape(b_i, out_ch, b_j, L)
    return jnp.transpose(out, (0, 2, 1, 3))


# ---------------------------------------------------------------------------
# Pure-JAX reference (F.conv1d grouped-batch semantics)
# ---------------------------------------------------------------------------
def _reference(x, weight, bias, *, stride=1, padding=0, dilation=1):
    x = jnp.real(x)
    b_i, b_j, c, h = x.shape
    _, O, _, K = weight.shape
    xpd = jnp.pad(x, ((0, 0), (0, 0), (0, 0), (padding, padding)))
    hp = h + 2 * padding
    L = (hp - dilation * (K - 1) - 1) // stride + 1
    span = (L - 1) * stride + 1
    taps = [jax.lax.slice(xpd, (0, 0, 0, k * dilation),
                          (b_i, b_j, c, k * dilation + span),
                          (1, 1, 1, stride)) for k in range(K)]
    xw = jnp.stack(taps, 0)                               # (K, b_i, b_j, c, L)
    out = jnp.einsum('iock,kijcl->ijol', weight, xw)
    if bias is not None:
        out = out + bias[:, None, :, None]
    return out


if __name__ == "__main__":
    # Small shapes implied by the forward: x (b_i, b_j, c, h),
    # weight (b_i, out_channels, in_channels, K), bias (b_i, out_channels).
    b_i, b_j, c, h = 2, 3, 4, 16
    out_ch, K = 8, 3

    key = jax.random.PRNGKey(0)
    kx, kw, kb = jax.random.split(key, 3)
    x = jax.random.normal(kx, (b_i, b_j, c, h), jnp.float32)
    weight = jax.random.normal(kw, (b_i, out_ch, c, K), jnp.float32)
    bias = jax.random.normal(kb, (b_i, out_ch), jnp.float32)

    # 1) stride=1 base config -> fused Pallas kernel.
    out = jax.block_until_ready(batch_conv1d(x, weight, bias, use_pallas=True))
    ref = _reference(x, weight, bias)
    assert out.shape == (b_i, b_j, out_ch, h - K + 1), out.shape
    assert jnp.allclose(out, ref, atol=1e-4, rtol=1e-4), "mismatch (fused)"

    # 2) stride=1, dilation=2, padding=2 -> fused kernel with dilated taps.
    out_d = jax.block_until_ready(
        batch_conv1d(x, weight, bias, stride=1, padding=2, dilation=2,
                     use_pallas=True))
    ref_d = _reference(x, weight, bias, stride=1, padding=2, dilation=2)
    assert out_d.shape == ref_d.shape, (out_d.shape, ref_d.shape)
    assert jnp.allclose(out_d, ref_d, atol=1e-4, rtol=1e-4), "mismatch (dilated)"

    # 3) stride=2, padding=1, dilation=2 -> im2col Pallas kernel.
    out2 = jax.block_until_ready(
        batch_conv1d(x, weight, bias, stride=2, padding=1, dilation=2,
                     use_pallas=True))
    ref2 = _reference(x, weight, bias, stride=2, padding=1, dilation=2)
    assert out2.shape == ref2.shape, (out2.shape, ref2.shape)
    assert jnp.allclose(out2, ref2, atol=1e-4, rtol=1e-4), "mismatch (strided)"

    # 4) no-bias path (fused kernel).
    out3 = jax.block_until_ready(batch_conv1d(x, weight, None, use_pallas=True))
    ref3 = _reference(x, weight, None)
    assert jnp.allclose(out3, ref3, atol=1e-4, rtol=1e-4), "mismatch (no bias)"

    # 5) default dispatch: this problem is tiny -> einsum bailout path.
    out4 = jax.block_until_ready(batch_conv1d(x, weight, bias))
    assert jnp.allclose(out4, ref, atol=1e-4, rtol=1e-4), "mismatch (auto)"

    print("KERNEL_OK")
</pallas_src>

<mosaic_0001>
module attributes {stable_mosaic.version = 11 : i64} {
  func.func @_fused_conv_kernel(%arg0: i32, %arg1: i32, %arg2: memref<1x1x4x130xf32, #tpu.memory_space<vmem>>, %arg3: memref<1x3x8x4xf32, #tpu.memory_space<vmem>>, %arg4: memref<1x8x1xf32, #tpu.memory_space<vmem>>, %arg5: memref<1x1x8x128xf32, #tpu.memory_space<vmem>>) attributes {dimension_semantics = [#tpu.dimension_semantics<parallel>, #tpu.dimension_semantics<parallel>], iteration_bounds = array<i64: 2, 3>, scalar_prefetch = 0 : i64, scratch_operands = 0 : i64, tpu.core_type = #tpu.core_type<tc>, window_params = [{transform_indices = @transform_0, window_bounds = array<i64: 1, 1, 4, 130>}, {transform_indices = @transform_1, window_bounds = array<i64: 1, 3, 8, 4>}, {transform_indices = @transform_2, window_bounds = array<i64: 1, 8, 1>}, {transform_indices = @transform_3, window_bounds = array<i64: 1, 1, 8, 128>}]} {
    %c0 = arith.constant 0 : index
    %c0_0 = arith.constant 0 : index
    %c0_1 = arith.constant 0 : index
    %0 = vector.load %arg4[%c0, %c0_0, %c0_1] : memref<1x8x1xf32, #tpu.memory_space<vmem>>, vector<1x8x1xf32>
    %1 = vector.shape_cast %0 : vector<1x8x1xf32> to vector<8x1xf32>
    %c0_2 = arith.constant 0 : index
    %c0_3 = arith.constant 0 : index
    %c0_4 = arith.constant 0 : index
    %c0_5 = arith.constant 0 : index
    %2 = vector.load %arg3[%c0_2, %c0_3, %c0_4, %c0_5] : memref<1x3x8x4xf32, #tpu.memory_space<vmem>>, vector<1x1x8x4xf32>
    %3 = vector.shape_cast %2 : vector<1x1x8x4xf32> to vector<8x4xf32>
    %c0_6 = arith.constant 0 : index
    %c1 = arith.constant 1 : index
    %c0_7 = arith.constant 0 : index
    %c0_8 = arith.constant 0 : index
    %4 = vector.load %arg3[%c0_6, %c1, %c0_7, %c0_8] : memref<1x3x8x4xf32, #tpu.memory_space<vmem>>, vector<1x1x8x4xf32>
    %5 = vector.shape_cast %4 : vector<1x1x8x4xf32> to vector<8x4xf32>
    %c0_9 = arith.constant 0 : index
    %c2 = arith.constant 2 : index
    %c0_10 = arith.constant 0 : index
    %c0_11 = arith.constant 0 : index
    %6 = vector.load %arg3[%c0_9, %c2, %c0_10, %c0_11] : memref<1x3x8x4xf32, #tpu.memory_space<vmem>>, vector<1x1x8x4xf32>
    %7 = vector.shape_cast %6 : vector<1x1x8x4xf32> to vector<8x4xf32>
    %cst = arith.constant 0.000000e+00 : f32
    %8 = vector.broadcast %cst : f32 to vector<8x128xf32>
    %c0_12 = arith.constant 0 : index
    %c0_13 = arith.constant 0 : index
    %c0_14 = arith.constant 0 : index
    %c0_15 = arith.constant 0 : index
    %9 = vector.load %arg2[%c0_12, %c0_13, %c0_14, %c0_15] : memref<1x1x4x130xf32, #tpu.memory_space<vmem>>, vector<1x1x4x128xf32>
    %10 = vector.shape_cast %9 : vector<1x1x4x128xf32> to vector<4x128xf32>
    %cst_16 = arith.constant dense<0.000000e+00> : vector<8x128xf32>
    %11 = tpu.matmul %3, %10, %cst_16 {dimension_numbers = #tpu.dot_dimension_numbers<[1], [0], [0], [1], [0, 0, 1, 1], [], []>} : vector<8x4xf32>, vector<4x128xf32>, vector<8x128xf32> -> vector<8x128xf32>
    %12 = arith.addf %8, %11 : vector<8x128xf32>
    %c0_17 = arith.constant 0 : index
    %c0_18 = arith.constant 0 : index
    %c0_19 = arith.constant 0 : index
    %c1_20 = arith.constant 1 : index
    %13 = vector.load %arg2[%c0_17, %c0_18, %c0_19, %c1_20] : memref<1x1x4x130xf32, #tpu.memory_space<vmem>>, vector<1x1x4x128xf32>
    %14 = vector.shape_cast %13 : vector<1x1x4x128xf32> to vector<4x128xf32>
    %cst_21 = arith.constant dense<0.000000e+00> : vector<8x128xf32>
    %15 = tpu.matmul %5, %14, %cst_21 {dimension_numbers = #tpu.dot_dimension_numbers<[1], [0], [0], [1], [0, 0, 1, 1], [], []>} : vector<8x4xf32>, vector<4x128xf32>, vector<8x128xf32> -> vector<8x128xf32>
    %16 = arith.addf %12, %15 : vector<8x128xf32>
    %c0_22 = arith.constant 0 : index
    %c0_23 = arith.constant 0 : index
    %c0_24 = arith.constant 0 : index
    %c2_25 = arith.constant 2 : index
    %17 = vector.load %arg2[%c0_22, %c0_23, %c0_24, %c2_25] : memref<1x1x4x130xf32, #tpu.memory_space<vmem>>, vector<1x1x4x128xf32>
    %18 = vector.shape_cast %17 : vector<1x1x4x128xf32> to vector<4x128xf32>
    %cst_26 = arith.constant dense<0.000000e+00> : vector<8x128xf32>
    %19 = tpu.matmul %7, %18, %cst_26 {dimension_numbers = #tpu.dot_dimension_numbers<[1], [0], [0], [1], [0, 0, 1, 1], [], []>} : vector<8x4xf32>, vector<4x128xf32>, vector<8x128xf32> -> vector<8x128xf32>
    %20 = arith.addf %16, %19 : vector<8x128xf32>
    %21 = vector.broadcast %1 : vector<8x1xf32> to vector<8x128xf32>
    %22 = arith.addf %20, %21 : vector<8x128xf32>
    %c0_27 = arith.constant 0 : index
    %c0_28 = arith.constant 0 : index
    %c0_29 = arith.constant 0 : index
    %c0_30 = arith.constant 0 : index
    %23 = vector.load %arg5[%c0_27, %c0_28, %c0_29, %c0_30] : memref<1x1x8x128xf32, #tpu.memory_space<vmem>>, vector<1x1x8x128xf32>
    %24 = vector.shape_cast %23 : vector<1x1x8x128xf32> to vector<8x128xf32>
    %25 = vector.shape_cast %22 : vector<8x128xf32> to vector<1x1x8x128xf32>
    tpu.vector_store %arg5[%c0_27, %c0_28, %c0_29, %c0_30], %25 {strides = array<i32>} : memref<1x1x8x128xf32, #tpu.memory_space<vmem>>, vector<1x1x8x128xf32>,
    return
  }
  func.func @transform_0(%arg0: i32, %arg1: i32) -> (i32, i32, i32, i32) {
    %c0_i32 = arith.constant 0 : i32
    %c0_i32_0 = arith.constant 0 : i32
    %c0_i32_1 = arith.constant 0 : i32
    return %arg0, %arg1, %c0_i32, %c0_i32_0 : i32, i32, i32, i32
  }
  func.func @transform_1(%arg0: i32, %arg1: i32) -> (i32, i32, i32, i32) {
    %c0_i32 = arith.constant 0 : i32
    %c0_i32_0 = arith.constant 0 : i32
    %c0_i32_1 = arith.constant 0 : i32
    %c0_i32_2 = arith.constant 0 : i32
    return %arg0, %c0_i32, %c0_i32_0, %c0_i32_1 : i32, i32, i32, i32
  }
  func.func @transform_2(%arg0: i32, %arg1: i32) -> (i32, i32, i32) {
    %c0_i32 = arith.constant 0 : i32
    %c0_i32_0 = arith.constant 0 : i32
    %c0_i32_1 = arith.constant 0 : i32
    return %arg0, %c0_i32, %c0_i32_0 : i32, i32, i32
  }
  func.func @transform_3(%arg0: i32, %arg1: i32) -> (i32, i32, i32, i32) {
    %c0_i32 = arith.constant 0 : i32
    %c0_i32_0 = arith.constant 0 : i32
    %c0_i32_1 = arith.constant 0 : i32
    return %arg0, %arg1, %c0_i32, %c0_i32_0 : i32, i32, i32, i32
  }
}

</mosaic_0001>

<llo_original>
// kernel: tpu_custom_call.1
$region0: #{tpu_custom_call.1}
  #allocation0 [shape = 'u32[]', space=smem, size = 0x4, offset = 0x4, fixed_abs, tag = 'smem constant byte address 0x4 - core index']
  #allocation1 [shape = 'u32[72,128]{1,0:T(1,128)}', space=vmem, size = 0x9000, scoped, tag = 'internal scratch']
  %s0 = inlined_call_operand.vmem [shape: f32[2,3,4,130], index: 0, kind: input, shape index: {}]
  %s1 = inlined_call_operand.vmem [shape: f32[2,3,8,4], index: 1, kind: input, shape index: {}]
  %s2 = inlined_call_operand.vmem [shape: f32[2,8,1], index: 2, kind: input, shape index: {}]
  %s3 = inlined_call_operand.hbm [shape: f32[2,3,8,128], index: 3, kind: output, shape index: {}]
  %s4 = sld [smem:[#allocation0]]
  $region45: #{tpu_custom_call.1} parent=0
    _
  %s6 = ssub.s32 1, %s4
  %s7 = scalar_select 0, %s6, %s4
  $region1: #{tpu_custom_call.1} parent=0
    #allocation2 [shape = 'u8[8192]{0}', space=vmem, size = 0x2000, scoped, tag = 'output window, operand 0']
    #allocation3 [shape = 's32[2]{0}', space=sflag, size = 0x8, scoped, tag = 'scoped memory for tpu_custom_call.1']
    %8 = vsyncpa [#allocation3], 0
    %s9 = scalar_lea.sflag [#allocation3], 1
    %10 = vsyncpa %s9, 0
    loop: start=0, step=1, limit=8
    $region2: #{tpu_custom_call.1} parent=1 // loop_pre_header
      _
    $region3: #{tpu_custom_call.1} parent=1 // loop_header
      %s12 = sphi 0, %s16
      %p13 = scmp.ge.s32.totalorder %s12, 8
      %s19 = sphi 0, %s31
      %s20 = sphi 0, %s27
      %s21 = sphi 0, %s19
      %s22 = sphi 0, %s20
      %s23 = sphi 0, %s21
      %s24 = sphi 0, %s22
      %s36 = sphi 0, %s38
      %s39 = sphi 0, %s36
      %s40 = sphi 0, %s39
      %s56 = sphi 0, %s40
      %s62 = sphi 0, %s64
      %s65 = sphi 0, %s62
      %s66 = sphi 0, %s65
      %s82 = sphi 0, %s66
      %s88 = sphi 0, %s90
      %s91 = sphi 0, %s88
      %s92 = sphi 0, %s91
      %s108 = sphi 0, %s92
      %s116 = sphi 0, %s118
      %s119 = sphi 0, %s116
      %s120 = sphi 0, %s119
      %s136 = sphi 0, %s120
    $region4: #{tpu_custom_call.1} parent=1 // loop_header_branch
      %15 = sbr.rel (%p13) target = $region8
    $region5: #{tpu_custom_call.1} parent=1 // loop_body
      %s17 = ssub.s32 %s12, 1
      %s18 = ssub.s32 %s12, 2
      %s25 = sadd.s32 1, %s20
      %p26 = scmp.ge.s32.totalorder %s25, 3
      %s27 = scalar_select %p26, 0, %s25
      %s28 = sadd.s32 1, %s19
      %s29 = scalar_select %p26, %s28, %s19
      %p30 = scmp.ge.s32.totalorder %s29, 2
      %s31 = scalar_select %p30, 0, %s29
      %s32 = ssub.s32 %s19, %s31
      %s33 = ssub.s32 %s20, %s27
      %s34 = sor.u32 %s32, %s33
      %p35 = scmp.eq.s32.totalorder %s34, 0
      %s37 = sadd.s32 %s36, 1
      %s38 = scalar_select %p35, %s36, %s37
      %p41 = pneg %p35
      %p42 = scmp.eq.s32.totalorder %s12, 5
      %p43 = por %p41, %p42
      %p44 = scmp.ne.s32.totalorder %s36, %s39
      %p45 = scmp.eq.s32.totalorder %s12, 0
      %p46 = por %p44, %p45
      %p47 = scmp.ne.s32.totalorder %s36, %s39
      %p48 = scmp.eq.s32.totalorder %s17, 5
      %p49 = por %p47, %p48
      %p50 = scmp.ne.s32.totalorder %s39, %s40
      %p51 = scmp.eq.s32.totalorder %s17, 0
      %p52 = por %p50, %p51
      %p53 = scmp.ne.s32.totalorder %s39, %s40
      %p54 = scmp.eq.s32.totalorder %s18, 5
      %p55 = por %p53, %p54
      %p57 = scmp.ne.s32.totalorder %s40, %s56
      %p58 = scmp.eq.s32.totalorder %s18, 0
      %p59 = por %p57, %p58
      %s60 = ssub.s32 %s19, %s31
      %p61 = scmp.eq.s32.totalorder %s60, 0
      %s63 = sadd.s32 %s62, 1
      %s64 = scalar_select %p61, %s62, %s63
      %p67 = pneg %p61
      %p68 = scmp.eq.s32.totalorder %s12, 5
      %p69 = por %p67, %p68
      %p70 = scmp.ne.s32.totalorder %s62, %s65
      %p71 = scmp.eq.s32.totalorder %s12, 0
      %p72 = por %p70, %p71
      %p73 = scmp.ne.s32.totalorder %s62, %s65
      %p74 = scmp.eq.s32.totalorder %s17, 5
      %p75 = por %p73, %p74
      %p76 = scmp.ne.s32.totalorder %s65, %s66
      %p77 = scmp.eq.s32.totalorder %s17, 0
      %p78 = por %p76, %p77
      %p79 = scmp.ne.s32.totalorder %s65, %s66
      %p80 = scmp.eq.s32.totalorder %s18, 5
      %p81 = por %p79, %p80
      %p83 = scmp.ne.s32.totalorder %s66, %s82
      %p84 = scmp.eq.s32.totalorder %s18, 0
      %p85 = por %p83, %p84
      %s86 = ssub.s32 %s19, %s31
      %p87 = scmp.eq.s32.totalorder %s86, 0
      %s89 = sadd.s32 %s88, 1
      %s90 = scalar_select %p87, %s88, %s89
      %p93 = pneg %p87
      %p94 = scmp.eq.s32.totalorder %s12, 5
      %p95 = por %p93, %p94
      %p96 = scmp.ne.s32.totalorder %s88, %s91
      %p97 = scmp.eq.s32.totalorder %s12, 0
      %p98 = por %p96, %p97
      %p99 = scmp.ne.s32.totalorder %s88, %s91
      %p100 = scmp.eq.s32.totalorder %s17, 5
      %p101 = por %p99, %p100
      %p102 = scmp.ne.s32.totalorder %s91, %s92
      %p103 = scmp.eq.s32.totalorder %s17, 0
      %p104 = por %p102, %p103
      %p105 = scmp.ne.s32.totalorder %s91, %s92
      %p106 = scmp.eq.s32.totalorder %s18, 5
      %p107 = por %p105, %p106
      %p109 = scmp.ne.s32.totalorder %s92, %s108
      %p110 = scmp.eq.s32.totalorder %s18, 0
      %p111 = por %p109, %p110
      %s112 = ssub.s32 %s19, %s31
      %s113 = ssub.s32 %s20, %s27
      %s114 = sor.u32 %s112, %s113
      %p115 = scmp.eq.s32.totalorder %s114, 0
      %s117 = sadd.s32 %s116, 1
      %s118 = scalar_select %p115, %s116, %s117
      %p121 = pneg %p115
      %p122 = scmp.eq.s32.totalorder %s12, 5
      %p123 = por %p121, %p122
      %p124 = scmp.ne.s32.totalorder %s116, %s119
      %p125 = scmp.eq.s32.totalorder %s12, 0
      %p126 = por %p124, %p125
      %p127 = scmp.ne.s32.totalorder %s116, %s119
      %p128 = scmp.eq.s32.totalorder %s17, 5
      %p129 = por %p127, %p128
      %p130 = scmp.ne.s32.totalorder %s119, %s120
      %p131 = scmp.eq.s32.totalorder %s17, 0
      %p132 = por %p130, %p131
      %p133 = scmp.ne.s32.totalorder %s119, %s120
      %p134 = scmp.eq.s32.totalorder %s18, 5
      %p135 = por %p133, %p134
      %p137 = scmp.ne.s32.totalorder %s120, %s136
      %p138 = scmp.eq.s32.totalorder %s18, 0
      %p139 = por %p137, %p138
      %p140 = scmp.le.s32.totalorder 1, %s12
      %p141 = scmp.lt.s32.totalorder %s12, 7
      %p142 = pnand %p140, %p141
      %p143 = pneg %p142
      // Predicated region
      $region9: #{tpu_custom_call.1} parent=5 // pred_check
        _
      $region10: #{tpu_custom_call.1} parent=5 // pred_check_branch
        %145 = sbr.rel (%p142) target = $region12
      $region11: #{tpu_custom_call.1} parent=5 // pred_region
        %s146 = ssub.s32 %s12, 1
      $region12: #{tpu_custom_call.1} parent=5 // pred_fallthru
        _
      %p147 = scmp.lt.s32.totalorder %s12, 6
      // Predicated region
      $region13: #{tpu_custom_call.1} parent=5 // pred_check
        %p148 = pneg %p147
      $region14: #{tpu_custom_call.1} parent=5 // pred_check_branch
        %150 = sbr.rel (%p148) target = $region16
      $region15: #{tpu_custom_call.1} parent=5 // pred_region
        // Predicated region
        $region17: #{tpu_custom_call.1} parent=15 // pred_check
          %p151 = pneg %p46
        $region18: #{tpu_custom_call.1} parent=15 // pred_check_branch
          %153 = sbr.rel (%p151) target = $region20
        $region19: #{tpu_custom_call.1} parent=15 // pred_region
          %p154 = scmp.lt.s32.totalorder %s19, 1
          %s155 = scalar_select %p154, %s19, 1
          %p156 = scmp.lt.s32.totalorder %s20, 2
          %s157 = scalar_select %p156, %s20, 2
          %s158 = smul.addr %s157, 2
          %s159 = smul.addr %s155, 6
          %s160 = sadd.s32 %s158, %s159
          %s161 = smul.addr %s160, 4
          %s162 = scalar_lea.vmem %s0, %s161
        $region20: #{tpu_custom_call.1} parent=15 // pred_fallthru
          _
        // Predicated region
        $region21: #{tpu_custom_call.1} parent=15 // pred_check
          %p163 = pneg %p72
        $region22: #{tpu_custom_call.1} parent=15 // pred_check_branch
          %165 = sbr.rel (%p163) target = $region24
        $region23: #{tpu_custom_call.1} parent=15 // pred_region
          %p166 = scmp.lt.s32.totalorder %s19, 1
          %s167 = scalar_select %p166, %s19, 1
          %s168 = smul.addr %s167, 3
          %s169 = smul.addr %s168, 8
          %s170 = scalar_lea.vmem %s1, %s169
        $region24: #{tpu_custom_call.1} parent=15 // pred_fallthru
          _
        // Predicated region
        $region25: #{tpu_custom_call.1} parent=15 // pred_check
          %p171 = pneg %p98
        $region26: #{tpu_custom_call.1} parent=15 // pred_check_branch
          %173 = sbr.rel (%p171) target = $region28
        $region27: #{tpu_custom_call.1} parent=15 // pred_region
          %p174 = scmp.lt.s32.totalorder %s19, 1
          %s175 = scalar_select %p174, %s19, 1
          %s176 = smul.addr %s175, 8
          %s177 = scalar_lea.vmem %s2, %s176
        $region28: #{tpu_custom_call.1} parent=15 // pred_fallthru
          _
      $region16: #{tpu_custom_call.1} parent=5 // pred_fallthru
        _
      %p178 = scmp.le.s32.totalorder 1, %s12
      %p179 = scmp.lt.s32.totalorder %s12, 7
      %p180 = pnand %p178, %p179
      %p181 = pneg %p180
      // Predicated region
      $region29: #{tpu_custom_call.1} parent=5 // pred_check
        _
      $region30: #{tpu_custom_call.1} parent=5 // pred_check_branch
        %183 = sbr.rel (%p180) target = $region32
      $region31: #{tpu_custom_call.1} parent=5 // pred_region
        %s184 = ssub.s32 %s12, 1
        %p185 = scmp.lt.s32.totalorder %s21, 1
        %s186 = scalar_select %p185, %s21, 1
        %p187 = scmp.lt.s32.totalorder %s22, 2
        %s188 = scalar_select %p187, %s22, 2
        %s189 = smul.addr %s188, 2
        %s190 = smul.addr %s186, 6
        %s191 = sadd.s32 %s189, %s190
        %s192 = smul.addr %s191, 4
        %s193 = scalar_lea.vmem %s0, %s192
        %p194 = pneg %p52
        %p195 = pneg %p49
        %p196 = scmp.lt.s32.totalorder %s21, 1
        %s197 = scalar_select %p196, %s21, 1
        %s198 = smul.addr %s197, 3
        %s199 = smul.addr %s198, 8
        %s200 = scalar_lea.vmem %s1, %s199
        %p201 = pneg %p78
        %p202 = pneg %p75
        %p203 = scmp.lt.s32.totalorder %s21, 1
        %s204 = scalar_select %p203, %s21, 1
        %s205 = smul.addr %s204, 8
        %s206 = scalar_lea.vmem %s2, %s205
        %p207 = pneg %p104
        %p208 = pneg %p101
        %p209 = pneg %p132
        %p210 = pneg %p129
        %s211 = sand.u32 %s119, 1
        %s212 = scalar_lea.sflag [#allocation3], %s211
        %s213 = sand.u32 %s119, 1
        %s214 = smul.addr %s213, 8
        %s215 = scalar_lea.vmem [#allocation2], %s214
        %p216 = scmp.lt.s32.totalorder %s21, 1
        %s217 = scalar_select %p216, %s21, 1
        %p218 = scmp.lt.s32.totalorder %s22, 2
        %s219 = scalar_select %p218, %s22, 2
        %s220 = smul.addr %s219, 2
        %s221 = smul.addr %s217, 6
        %s222 = sadd.s32 %s220, %s221
        %s223 = smul.addr %s222, 4
        %s224 = scalar_lea.vmem %s0, %s223
        %p225 = scmp.lt.s32.totalorder %s21, 1
        %s226 = scalar_select %p225, %s21, 1
        %s227 = smul.addr %s226, 3
        %s228 = smul.addr %s227, 8
        %s229 = scalar_lea.vmem %s1, %s228
        %p230 = scmp.lt.s32.totalorder %s21, 1
        %s231 = scalar_select %p230, %s21, 1
        %s232 = smul.addr %s231, 8
        %s233 = scalar_lea.vmem %s2, %s232
        %v234 = vld [vmem:[%s233] sm:$0xff]
        %v235 = vld [vmem:[%s229] sm:$0xff]
        %s236 = scalar_lea.vmem %s229, 8
        %v237 = vld [vmem:[%s236] sm:$0xff]
        %s238 = scalar_lea.vmem %s229, 16
        %v239 = vld [vmem:[%s238] sm:$0xff]
        %v240 = vld [vmem:[%s224] sm:$0xf]
        %v241 = vld [vmem:[%s224] sm:$0xff]
        %243 = vst [vmem:[#allocation1] ss:$2 sm:$0xff] %v241
        %v244 = vld.sshfl [vmem:[#allocation1] sm:$0xff pattern:$0x75316420]
        %v245 = vld.sshfl [vmem:[#allocation1 + $0x8] sm:$0xff pattern:$0x75316420]
        %246 = vrot.lane.b32.xlu0 %v244, 127
        %v247 = vpop.permute.xlu0 %246
        %248 = vrot.lane.b32.xlu0 %v245, 127
        %v249 = vpop.permute.xlu0 %248
        %vm250 = vcmask 1039360
        %v251 = vsel %vm250, %v247, %v249
        %vm252 = vcmask 31744
        %v254 = vsel %vm252, %v237, 0
        %vm256 = vcmask 1043456
        %v257 = vsel %vm256, %v251, 0
        %259 = vmatpush.msra.mxu0 0.0
        %260 = vmatpush.msra.mxu0 0.0
        %261 = vmatpush.msra.mxu0 0.0
        %262 = vmatpush.msra.mxu0 0.0
        %263 = vmatpush.msra.mxu0 0.0
        %264 = vmatpush.msra.mxu0 0.0
        %265 = vmatpush.msra.mxu0 0.0
        %266 = vmatpush.msra.mxu0 0.0
        %267 = vmatpush.msra.mxu0 0.0
        %268 = vmatpush.msra.mxu0 0.0
        %269 = vmatpush.msra.mxu0 0.0
        %270 = vmatpush.msra.mxu0 0.0
        %271 = vmatpush.msra.mxu0 0.0
        %272 = vmatpush.msra.mxu0 0.0
        %273 = vmatpush.msra.mxu0 0.0
        %274 = vmatpush.msra.mxu0 %v257
        %275 = vmatmul.f32.gmra.mxu0 %v254
        %v276 = vpop.f32.mrf.mxu0
        %v277 = vadd.f32 0.0, %v276
        %278 = vdwg.mxu0
        %v280 = vsel %vm252, %v235, 0
        %v283 = vsel %vm256, %v240, 0
        %285 = vmatpush.msra.mxu0 0.0
        %286 = vmatpush.msra.mxu0 0.0
        %287 = vmatpush.msra.mxu0 0.0
        %288 = vmatpush.msra.mxu0 0.0
        %289 = vmatpush.msra.mxu0 0.0
        %290 = vmatpush.msra.mxu0 0.0
        %291 = vmatpush.msra.mxu0 0.0
        %292 = vmatpush.msra.mxu0 0.0
        %293 = vmatpush.msra.mxu0 0.0
        %294 = vmatpush.msra.mxu0 0.0
        %295 = vmatpush.msra.mxu0 0.0
        %296 = vmatpush.msra.mxu0 0.0
        %297 = vmatpush.msra.mxu0 0.0
        %298 = vmatpush.msra.mxu0 0.0
        %299 = vmatpush.msra.mxu0 0.0
        %300 = vmatpush.msra.mxu0 %v283
        %301 = vmatmul.f32.gmra.mxu0 %v280
        %v302 = vpop.f32.mrf.mxu0
        %v303 = vadd.f32 %v277, %v302
        %304 = vdwg.mxu0
        %v305 = vld [vmem:[%s224] sm:$0xff]
        %307 = vst [vmem:[#allocation1] ss:$2 sm:$0xff] %v305
        %v308 = vld.sshfl [vmem:[#allocation1] sm:$0xff pattern:$0x75316420]
        %v309 = vld.sshfl [vmem:[#allocation1 + $0x8] sm:$0xff pattern:$0x75316420]
        %310 = vrot.lane.b32.xlu0 %v308, 126
        %v311 = vpop.permute.xlu0 %310
        %312 = vrot.lane.b32.xlu0 %v309, 126
        %v313 = vpop.permute.xlu0 %312
        %vm314 = vcmask 1031168
        %v315 = vsel %vm314, %v311, %v313
        %v317 = vsel %vm252, %v239, 0
        %v319 = vsel %vm256, %v315, 0
        %321 = vmatpush.msra.mxu0 0.0
        %322 = vmatpush.msra.mxu0 0.0
        %323 = vmatpush.msra.mxu0 0.0
        %324 = vmatpush.msra.mxu0 0.0
        %325 = vmatpush.msra.mxu0 0.0
        %326 = vmatpush.msra.mxu0 0.0
        %327 = vmatpush.msra.mxu0 0.0
        %328 = vmatpush.msra.mxu0 0.0
        %329 = vmatpush.msra.mxu0 0.0
        %330 = vmatpush.msra.mxu0 0.0
        %331 = vmatpush.msra.mxu0 0.0
        %332 = vmatpush.msra.mxu0 0.0
        %333 = vmatpush.msra.mxu0 0.0
        %334 = vmatpush.msra.mxu0 0.0
        %335 = vmatpush.msra.mxu0 0.0
        %336 = vmatpush.msra.mxu0 %v319
        %337 = vmatmul.f32.gmra.mxu0 %v317
        %v338 = vpop.f32.mrf.mxu0
        %v339 = vadd.f32 0.0, %v338
        %340 = vdwg.mxu0
        %v341 = vadd.f32 %v303, %v339
        %343 = vset.pattern.permute.xlu0 0
        %344 = vperm.xlu0 %343, %v234
        %v345 = vpop.permute.xlu0 %344
        %v347 = vadd.f32 %v341, %v345
        %348 = vst [vmem:[%s215] sm:$0xff] %v347
        %s349 = sand.u32 %s119, 1
        %s350 = scalar_lea.sflag [#allocation3], %s349
        %s351 = sand.u32 %s119, 1
        %s352 = smul.addr %s351, 8
        %s353 = scalar_lea.vmem [#allocation2], %s352
        // Predicated region
        $region33: #{tpu_custom_call.1} parent=31 // pred_check
          %p354 = pneg %p129
        $region34: #{tpu_custom_call.1} parent=31 // pred_check_branch
          %356 = sbr.rel (%p354) target = $region36
        $region35: #{tpu_custom_call.1} parent=31 // pred_region
          %358 = vsyncadd %s350, 0
          %s359 = smul.addr %s21, 3
          %s360 = sadd.s32 %s22, %s359
          %s361 = smul.addr %s360, 8
          %s362 = scalar_lea.hbm %s3, %s361
          %s364 = sshll.u32 %s353, 4
          %s365 = int_to_ptr.vmem [resolvable:$true] %s364
          %s366 = sshll.u32 %s362, 4
          %s367 = int_to_ptr.hbm [resolvable:$true] %s366
          %369 = dma.vmem_to_hbm [thread:$0]  %s365, 128, %s367, %s350
        $region36: #{tpu_custom_call.1} parent=31 // pred_fallthru
          _
      $region32: #{tpu_custom_call.1} parent=5 // pred_fallthru
        _
      %p370 = scmp.le.s32.totalorder 2, %s12
      // Predicated region
      $region37: #{tpu_custom_call.1} parent=5 // pred_check
        %p371 = pneg %p370
      $region38: #{tpu_custom_call.1} parent=5 // pred_check_branch
        %373 = sbr.rel (%p371) target = $region40
      $region39: #{tpu_custom_call.1} parent=5 // pred_region
        %s374 = ssub.s32 %s12, 2
        // Predicated region
        $region41: #{tpu_custom_call.1} parent=39 // pred_check
          %p375 = pneg %p135
        $region42: #{tpu_custom_call.1} parent=39 // pred_check_branch
          %377 = sbr.rel (%p375) target = $region44
        $region43: #{tpu_custom_call.1} parent=39 // pred_region
          %s378 = sand.u32 %s120, 1
          %s379 = scalar_lea.sflag [#allocation3], %s378
          %s380 = sand.u32 %s120, 1
          %s381 = smul.addr %s380, 8
          %s382 = scalar_lea.vmem [#allocation2], %s381
          %384 = dma.done %s379, 128
        $region44: #{tpu_custom_call.1} parent=39 // pred_fallthru
          _
      $region40: #{tpu_custom_call.1} parent=5 // pred_fallthru
        _
    $region6: #{tpu_custom_call.1} parent=1 // loop_footer
      %s16 = sadd.s32 1, %s12
    $region7: #{tpu_custom_call.1} parent=1 // loop_footer_branch
      %11 = sbr.rel target = $region3
    $region8: #{tpu_custom_call.1} parent=1 // loop_exit
      _
    %385 = vsyncpa [#allocation3], 1
    %s386 = scalar_lea.sflag [#allocation3], 1
    %387 = vsyncpa %s386, 1

</llo_original>
